<compile_context>
chip_gen: v7x
topology: tpu7x:2x2x1
jax: 0.10.0
libtpu: 0.0.40
codegen_flags: <defaults>
</compile_context>

<pallas_src>
import jax
import jax.numpy as jnp
from jax.experimental import pallas as pl
from jax.experimental.pallas import tpu as pltpu

HIDDEN = 768
BOTTLENECK = 64
NUM_LAYERS = 12       # bert-base-uncased num_hidden_layers
NUM_LABELS = 3
VOCAB = 100

LANE = 128
SUBLANE = 8


def _round_up(x, m):
    return (x + m - 1) // m * m


# ---------------------------------------------------------------------------
# Pallas kernel
# ---------------------------------------------------------------------------
def adapter_kernel(x_ref, wd_ref, bd_ref, wu_ref, bu_ref, o_ref):
    """One (layer, row-tile) block: out = x + up_proj(relu(down_proj(x))).

    x is f32; wd/wu arrive as bf16 (half the HBM bytes) and are up-cast in
    VMEM/vregs so all matmul accumulation and the residual add stay f32.
    """
    x = x_ref[0]                                         # [tile_r, H] f32
    wd = wd_ref[0].astype(jnp.float32)                   # [H, Bn]
    wu = wu_ref[0].astype(jnp.float32)                   # [Bn, H]
    h = jnp.dot(x, wd, preferred_element_type=jnp.float32) + bd_ref[0]
    h = jnp.maximum(h, 0.0)                              # ReLU
    y = jnp.dot(h, wu, preferred_element_type=jnp.float32) + bu_ref[0]
    o_ref[0] = (y + x).astype(o_ref.dtype)               # residual add


# ---------------------------------------------------------------------------
# Wrapper around pallas_call
# ---------------------------------------------------------------------------
def fused_adapter_forward(x_stack, wd, bd, wu, bu, *, tile_r=None):
    """Apply all NUM_LAYERS adapters in a single pallas_call.

    x_stack: [L, R, H] f32   wd: [L, H, Bn] bf16   bd: [L, 1, Bn] f32
    wu: [L, Bn, H] bf16      bu: [L, 1, H] f32
    Returns: [L, R, H] f32
    """
    L, R, H = x_stack.shape
    Bn = wd.shape[-1]

    # Row tile: multiple of 8 sublanes, capped at 512 (≈85% of HBM roofline);
    # double-buffered in+out f32 tiles (~6 MiB) + bf16 weights fit the scoped
    # VMEM default on v5e/v6e/v7x without raising vmem_limit_bytes.
    if tile_r is None:
        tile_r = min(512, _round_up(R, SUBLANE))
    R_pad = _round_up(R, tile_r)
    if R_pad != R:
        x_stack = jnp.pad(x_stack, ((0, 0), (0, R_pad - R), (0, 0)))
    n_row = R_pad // tile_r

    w_itemsize = wd.dtype.itemsize                      # 2 for bf16
    flops = 2 * L * R_pad * H * Bn * 2                  # two matmuls per row
    bytes_accessed = (4 * 2 * L * R_pad * H             # activations in + out (f32)
                      + w_itemsize * L * (H * Bn + Bn * H)   # bf16 weights
                      + 4 * L * (Bn + H))                    # f32 biases

    out = pl.pallas_call(
        adapter_kernel,
        out_shape=jax.ShapeDtypeStruct((L, R_pad, H), x_stack.dtype),
        grid=(L, n_row),
        in_specs=[
            pl.BlockSpec((1, tile_r, H), lambda l, r: (l, r, 0)),  # x tile
            pl.BlockSpec((1, H, Bn), lambda l, r: (l, 0, 0)),      # wd (layer-resident)
            pl.BlockSpec((1, 1, Bn), lambda l, r: (l, 0, 0)),      # bd
            pl.BlockSpec((1, Bn, H), lambda l, r: (l, 0, 0)),      # wu
            pl.BlockSpec((1, 1, H), lambda l, r: (l, 0, 0)),       # bu
        ],
        out_specs=pl.BlockSpec((1, tile_r, H), lambda l, r: (l, r, 0)),
        # Safe: x_stack (the padded slab) is always freshly created inside jit.
        input_output_aliases={0: 0},
        compiler_params=pltpu.CompilerParams(
            dimension_semantics=("parallel", "parallel")),
        cost_estimate=pl.CostEstimate(
            flops=flops, transcendentals=0, bytes_accessed=bytes_accessed),
    )(x_stack, wd, bd, wu, bu)
    if R_pad != R:
        out = out[:, :R, :]
    return out


# ---------------------------------------------------------------------------
# Model: parameters + forward
# ---------------------------------------------------------------------------
def init_params(key):
    n_keys = 2 + NUM_LAYERS + 4 * NUM_LAYERS + 2
    keys = iter(jax.random.split(key, n_keys))
    p = {}
    # deterministic surrogate "BERT" embeddings / mixers (glue, not the hot path)
    p["tok_emb"] = jax.random.normal(next(keys), (VOCAB, HIDDEN), jnp.float32) * 0.02
    p["type_emb"] = jax.random.normal(next(keys), (2, HIDDEN), jnp.float32) * 0.02
    p["layer_mix"] = [
        jax.random.normal(next(keys), (HIDDEN, HIDDEN), jnp.float32)
        * (1.0 / jnp.sqrt(HIDDEN))
        for _ in range(NUM_LAYERS)
    ]
    # adapters: Linear(768->64), Linear(64->768); stored pre-transposed [in, out]
    # and stacked along a leading layer axis.  Weights stored in bf16 (halves
    # weight HBM traffic); biases stay f32.  Done here, once, not per-call.
    wd_l, bd_l, wu_l, bu_l = [], [], [], []
    for _ in range(NUM_LAYERS):
        wd_l.append(jax.random.normal(next(keys), (HIDDEN, BOTTLENECK), jnp.float32) * 0.02)
        bd_l.append(jax.random.normal(next(keys), (1, BOTTLENECK), jnp.float32) * 0.02)
        wu_l.append(jax.random.normal(next(keys), (BOTTLENECK, HIDDEN), jnp.float32) * 0.02)
        bu_l.append(jax.random.normal(next(keys), (1, HIDDEN), jnp.float32) * 0.02)
    p["wd"] = jnp.stack(wd_l).astype(jnp.bfloat16)     # [L, H, Bn]
    p["bd"] = jnp.stack(bd_l)                          # [L, 1, Bn] f32
    p["wu"] = jnp.stack(wu_l).astype(jnp.bfloat16)     # [L, Bn, H]
    p["bu"] = jnp.stack(bu_l)                          # [L, 1, H]  f32
    # classifier Linear(768 -> num_labels), stored pre-transposed [in, out]
    p["wc"] = jax.random.normal(next(keys), (HIDDEN, NUM_LABELS), jnp.float32) * 0.02
    p["bc"] = jax.random.normal(next(keys), (1, NUM_LABELS), jnp.float32) * 0.02
    return p


def bert_surrogate_layer_stack(params, input_ids, attn_mask, token_type_ids):
    """Deterministic stand-in for BertModel(output_hidden_states=True).

    Writes the NUM_LAYERS encoder-layer outputs directly into a pre-allocated
    [L, B*S, H] slab (no extra jnp.stack copy on the memory-bound path).
    """
    # TODO(synk): the pretrained BERT encoder itself has no in-script Pallas
    # equivalent (checkpoint load + full transformer stack); replaced by a
    # deterministic surrogate so the adapter/classifier hot path is exercised.
    h = params["tok_emb"][input_ids] + params["type_emb"][token_type_ids]
    h = h * attn_mask[..., None].astype(h.dtype)
    B, S, H = h.shape
    x_stack = jnp.zeros((NUM_LAYERS, B * S, H), h.dtype)
    for li in range(NUM_LAYERS):
        h = jnp.tanh(h @ params["layer_mix"][li])
        x_stack = x_stack.at[li].set(h.reshape(B * S, H))
    return x_stack


@jax.jit
def adapter_tuning_forward(params, input_ids, attn_mask, token_type_ids):
    B, S = input_ids.shape
    x_stack = bert_surrogate_layer_stack(
        params, input_ids, attn_mask, token_type_ids)          # [L, B*S, H]
    y_stack = fused_adapter_forward(
        x_stack, params["wd"], params["bd"], params["wu"], params["bu"])
    # Only the last layer's adapted hidden state feeds the classifier head.
    cls_output = y_stack[NUM_LAYERS - 1].reshape(B, S, HIDDEN)[:, 0, :]  # [B, H]
    # Classifier head in plain XLA (~9 KFLOP): a second pallas_call's launch
    # and extra HBM round-trip would dwarf the compute (per perf review).
    logits = cls_output @ params["wc"] + params["bc"]
    return logits


def reference_forward(params, input_ids, attn_mask, token_type_ids):
    """Pure-JAX reference of the same pipeline (for sanity check)."""
    x_stack = bert_surrogate_layer_stack(
        params, input_ids, attn_mask, token_type_ids)
    B, S = input_ids.shape
    last = None
    for i in range(NUM_LAYERS):
        x = x_stack[i]
        wd = params["wd"][i].astype(jnp.float32)
        wu = params["wu"][i].astype(jnp.float32)
        h = jnp.maximum(x @ wd + params["bd"][i], 0.0)
        last = h @ wu + params["bu"][i] + x
    cls_output = last.reshape(B, S, HIDDEN)[:, 0, :]
    return cls_output @ params["wc"] + params["bc"]


if __name__ == "__main__":
    key = jax.random.PRNGKey(0)
    pkey, ikey, tkey = jax.random.split(key, 3)

    B, S = 2, 8
    params = init_params(pkey)
    input_ids = jax.random.randint(ikey, (B, S), 0, VOCAB, dtype=jnp.int32)
    attn_mask = jnp.ones((B, S), dtype=jnp.int32)
    token_type_ids = jax.random.randint(tkey, (B, S), 0, 2, dtype=jnp.int32)

    logits = adapter_tuning_forward(params, input_ids, attn_mask, token_type_ids)
    logits = jax.block_until_ready(logits)

    ref = reference_forward(params, input_ids, attn_mask, token_type_ids)
    assert logits.shape == (B, NUM_LABELS)
    assert jnp.allclose(logits, ref, atol=1e-4, rtol=1e-4), (
        float(jnp.max(jnp.abs(logits - ref))))

    print("KERNEL_OK")
</pallas_src>

<mosaic_0001>
module attributes {stable_mosaic.version = 11 : i64} {
  func.func @adapter_kernel(%arg0: i32, %arg1: i32, %arg2: memref<1x16x768xf32, #tpu.memory_space<vmem>>, %arg3: memref<1x768x64xbf16, #tpu.memory_space<vmem>>, %arg4: memref<1x1x64xf32, #tpu.memory_space<vmem>>, %arg5: memref<1x64x768xbf16, #tpu.memory_space<vmem>>, %arg6: memref<1x1x768xf32, #tpu.memory_space<vmem>>, %arg7: memref<1x16x768xf32, #tpu.memory_space<vmem>>) attributes {dimension_semantics = [#tpu.dimension_semantics<parallel>, #tpu.dimension_semantics<parallel>], iteration_bounds = array<i64: 12, 1>, scalar_prefetch = 0 : i64, scratch_operands = 0 : i64, tpu.core_type = #tpu.core_type<tc>, window_params = [{transform_indices = @transform_0, window_bounds = array<i64: 1, 16, 768>}, {transform_indices = @transform_1, window_bounds = array<i64: 1, 768, 64>}, {transform_indices = @transform_2, window_bounds = array<i64: 1, 1, 64>}, {transform_indices = @transform_3, window_bounds = array<i64: 1, 64, 768>}, {transform_indices = @transform_4, window_bounds = array<i64: 1, 1, 768>}, {transform_indices = @transform_5, window_bounds = array<i64: 1, 16, 768>}]} {
    %c0 = arith.constant 0 : index
    %c0_0 = arith.constant 0 : index
    %c0_1 = arith.constant 0 : index
    %0 = vector.load %arg2[%c0, %c0_0, %c0_1] : memref<1x16x768xf32, #tpu.memory_space<vmem>>, vector<1x16x768xf32>
    %1 = vector.shape_cast %0 : vector<1x16x768xf32> to vector<16x768xf32>
    %c0_2 = arith.constant 0 : index
    %c0_3 = arith.constant 0 : index
    %c0_4 = arith.constant 0 : index
    %2 = vector.load %arg3[%c0_2, %c0_3, %c0_4] : memref<1x768x64xbf16, #tpu.memory_space<vmem>>, vector<1x768x64xbf16>
    %3 = vector.shape_cast %2 : vector<1x768x64xbf16> to vector<768x64xbf16>
    %4 = arith.extf %3 : vector<768x64xbf16> to vector<768x64xf32>
    %c0_5 = arith.constant 0 : index
    %c0_6 = arith.constant 0 : index
    %c0_7 = arith.constant 0 : index
    %5 = vector.load %arg5[%c0_5, %c0_6, %c0_7] : memref<1x64x768xbf16, #tpu.memory_space<vmem>>, vector<1x64x768xbf16>
    %6 = vector.shape_cast %5 : vector<1x64x768xbf16> to vector<64x768xbf16>
    %7 = arith.extf %6 : vector<64x768xbf16> to vector<64x768xf32>
    %cst = arith.constant dense<0.000000e+00> : vector<16x64xf32>
    %8 = tpu.matmul %1, %4, %cst {dimension_numbers = #tpu.dot_dimension_numbers<[1], [0], [0], [1], [0, 0, 1, 1], [], []>} : vector<16x768xf32>, vector<768x64xf32>, vector<16x64xf32> -> vector<16x64xf32>
    %c0_8 = arith.constant 0 : index
    %c0_9 = arith.constant 0 : index
    %c0_10 = arith.constant 0 : index
    %9 = vector.load %arg4[%c0_8, %c0_9, %c0_10] : memref<1x1x64xf32, #tpu.memory_space<vmem>>, vector<1x1x64xf32>
    %10 = vector.shape_cast %9 : vector<1x1x64xf32> to vector<1x64xf32>
    %11 = vector.broadcast %10 : vector<1x64xf32> to vector<16x64xf32>
    %12 = arith.addf %8, %11 : vector<16x64xf32>
    %cst_11 = arith.constant 0.000000e+00 : f32
    %13 = vector.broadcast %cst_11 : f32 to vector<16x64xf32>
    %14 = arith.maximumf %12, %13 : vector<16x64xf32>
    %cst_12 = arith.constant dense<0.000000e+00> : vector<16x768xf32>
    %15 = tpu.matmul %14, %7, %cst_12 {dimension_numbers = #tpu.dot_dimension_numbers<[1], [0], [0], [1], [0, 0, 1, 1], [], []>} : vector<16x64xf32>, vector<64x768xf32>, vector<16x768xf32> -> vector<16x768xf32>
    %c0_13 = arith.constant 0 : index
    %c0_14 = arith.constant 0 : index
    %c0_15 = arith.constant 0 : index
    %16 = vector.load %arg6[%c0_13, %c0_14, %c0_15] : memref<1x1x768xf32, #tpu.memory_space<vmem>>, vector<1x1x768xf32>
    %17 = vector.shape_cast %16 : vector<1x1x768xf32> to vector<1x768xf32>
    %18 = vector.broadcast %17 : vector<1x768xf32> to vector<16x768xf32>
    %19 = arith.addf %15, %18 : vector<16x768xf32>
    %20 = arith.addf %19, %1 : vector<16x768xf32>
    %c0_16 = arith.constant 0 : index
    %c0_17 = arith.constant 0 : index
    %c0_18 = arith.constant 0 : index
    %21 = vector.load %arg7[%c0_16, %c0_17, %c0_18] : memref<1x16x768xf32, #tpu.memory_space<vmem>>, vector<1x16x768xf32>
    %22 = vector.shape_cast %21 : vector<1x16x768xf32> to vector<16x768xf32>
    %23 = vector.shape_cast %20 : vector<16x768xf32> to vector<1x16x768xf32>
    tpu.vector_store %arg7[%c0_16, %c0_17, %c0_18], %23 {strides = array<i32>} : memref<1x16x768xf32, #tpu.memory_space<vmem>>, vector<1x16x768xf32>,
    return
  }
  func.func @transform_0(%arg0: i32, %arg1: i32) -> (i32, i32, i32) {
    %c0_i32 = arith.constant 0 : i32
    %c0_i32_0 = arith.constant 0 : i32
    return %arg0, %arg1, %c0_i32 : i32, i32, i32
  }
  func.func @transform_1(%arg0: i32, %arg1: i32) -> (i32, i32, i32) {
    %c0_i32 = arith.constant 0 : i32
    %c0_i32_0 = arith.constant 0 : i32
    %c0_i32_1 = arith.constant 0 : i32
    return %arg0, %c0_i32, %c0_i32_0 : i32, i32, i32
  }
  func.func @transform_2(%arg0: i32, %arg1: i32) -> (i32, i32, i32) {
    %c0_i32 = arith.constant 0 : i32
    %c0_i32_0 = arith.constant 0 : i32
    %c0_i32_1 = arith.constant 0 : i32
    return %arg0, %c0_i32, %c0_i32_0 : i32, i32, i32
  }
  func.func @transform_3(%arg0: i32, %arg1: i32) -> (i32, i32, i32) {
    %c0_i32 = arith.constant 0 : i32
    %c0_i32_0 = arith.constant 0 : i32
    %c0_i32_1 = arith.constant 0 : i32
    return %arg0, %c0_i32, %c0_i32_0 : i32, i32, i32
  }
  func.func @transform_4(%arg0: i32, %arg1: i32) -> (i32, i32, i32) {
    %c0_i32 = arith.constant 0 : i32
    %c0_i32_0 = arith.constant 0 : i32
    %c0_i32_1 = arith.constant 0 : i32
    return %arg0, %c0_i32, %c0_i32_0 : i32, i32, i32
  }
  func.func @transform_5(%arg0: i32, %arg1: i32) -> (i32, i32, i32) {
    %c0_i32 = arith.constant 0 : i32
    %c0_i32_0 = arith.constant 0 : i32
    return %arg0, %arg1, %c0_i32 : i32, i32, i32
  }
}

</mosaic_0001>

<llo_original>
// kernel: adapter_tuning_forward.1
$region0: #{adapter_tuning_forward.1}
  #allocation0 [shape = 'u32[]', space=smem, size = 0x4, offset = 0x4, fixed_abs, tag = 'smem constant byte address 0x4 - core index']
  #allocation1 [shape = 'u32[144,128]{1,0:T(1,128)}', space=vmem, size = 0x12000, scoped, tag = 'internal scratch']
  %s0 = inlined_call_operand.vmem [shape: f32[12,16,768], index: 0, kind: input, shape index: {}, may-alias: {0,5}]
  %s1 = inlined_call_operand.vmem [shape: bf16[12,768,64], index: 1, kind: input, shape index: {}]
  %s2 = inlined_call_operand.vmem [shape: f32[12,1,64], index: 2, kind: input, shape index: {}]
  %s3 = inlined_call_operand.vmem [shape: bf16[12,64,768], index: 3, kind: input, shape index: {}]
  %s4 = inlined_call_operand.vmem [shape: f32[12,1,768], index: 4, kind: input, shape index: {}]
  %s5 = inlined_call_operand.vmem [shape: f32[12,16,768], index: 5, kind: output, shape index: {}, may-alias: {0,5}]
  %s6 = sld [smem:[#allocation0]]
  $region53: #{adapter_tuning_forward.1} parent=0
    _
  %s8 = ssub.s32 1, %s6
  %s9 = scalar_select 0, %s8, %s6
  loop: start=0, step=1, limit=14
  $region2: #{adapter_tuning_forward.1} parent=0 // loop_pre_header
    _
  $region3: #{adapter_tuning_forward.1} parent=0 // loop_header
    %s11 = sphi 0, %s15
    %p12 = scmp.ge.s32.totalorder %s11, 14
    %s18 = sphi 0, %s30
    %s19 = sphi 0, %s26
    %s20 = sphi 0, %s18
    %s21 = sphi 0, %s19
    %s22 = sphi 0, %s20
    %s23 = sphi 0, %s21
    %s35 = sphi 0, %s37
    %s38 = sphi 0, %s35
    %s39 = sphi 0, %s38
    %s55 = sphi 0, %s39
    %s61 = sphi 0, %s63
    %s64 = sphi 0, %s61
    %s65 = sphi 0, %s64
    %s81 = sphi 0, %s65
    %s87 = sphi 0, %s89
    %s90 = sphi 0, %s87
    %s91 = sphi 0, %s90
    %s107 = sphi 0, %s91
    %s113 = sphi 0, %s115
    %s116 = sphi 0, %s113
    %s117 = sphi 0, %s116
    %s133 = sphi 0, %s117
    %s139 = sphi 0, %s141
    %s142 = sphi 0, %s139
    %s143 = sphi 0, %s142
    %s159 = sphi 0, %s143
    %s167 = sphi 0, %s169
    %s170 = sphi 0, %s167
    %s171 = sphi 0, %s170
    %s187 = sphi 0, %s171
  $region4: #{adapter_tuning_forward.1} parent=0 // loop_header_branch
    %14 = sbr.rel (%p12) target = $region8
  $region5: #{adapter_tuning_forward.1} parent=0 // loop_body
    %s16 = ssub.s32 %s11, 1
    %s17 = ssub.s32 %s11, 2
    %s24 = sadd.s32 1, %s19
    %p25 = scmp.ge.s32.totalorder %s24, 1
    %s26 = scalar_select %p25, 0, %s24
    %s27 = sadd.s32 1, %s18
    %s28 = scalar_select %p25, %s27, %s18
    %p29 = scmp.ge.s32.totalorder %s28, 12
    %s30 = scalar_select %p29, 0, %s28
    %s31 = ssub.s32 %s18, %s30
    %s32 = ssub.s32 %s19, %s26
    %s33 = sor.u32 %s31, %s32
    %p34 = scmp.eq.s32.totalorder %s33, 0
    %s36 = sadd.s32 %s35, 1
    %s37 = scalar_select %p34, %s35, %s36
    %p40 = pneg %p34
    %p41 = scmp.eq.s32.totalorder %s11, 11
    %p42 = por %p40, %p41
    %p43 = scmp.ne.s32.totalorder %s35, %s38
    %p44 = scmp.eq.s32.totalorder %s11, 0
    %p45 = por %p43, %p44
    %p46 = scmp.ne.s32.totalorder %s35, %s38
    %p47 = scmp.eq.s32.totalorder %s16, 11
    %p48 = por %p46, %p47
    %p49 = scmp.ne.s32.totalorder %s38, %s39
    %p50 = scmp.eq.s32.totalorder %s16, 0
    %p51 = por %p49, %p50
    %p52 = scmp.ne.s32.totalorder %s38, %s39
    %p53 = scmp.eq.s32.totalorder %s17, 11
    %p54 = por %p52, %p53
    %p56 = scmp.ne.s32.totalorder %s39, %s55
    %p57 = scmp.eq.s32.totalorder %s17, 0
    %p58 = por %p56, %p57
    %s59 = ssub.s32 %s18, %s30
    %p60 = scmp.eq.s32.totalorder %s59, 0
    %s62 = sadd.s32 %s61, 1
    %s63 = scalar_select %p60, %s61, %s62
    %p66 = pneg %p60
    %p67 = scmp.eq.s32.totalorder %s11, 11
    %p68 = por %p66, %p67
    %p69 = scmp.ne.s32.totalorder %s61, %s64
    %p70 = scmp.eq.s32.totalorder %s11, 0
    %p71 = por %p69, %p70
    %p72 = scmp.ne.s32.totalorder %s61, %s64
    %p73 = scmp.eq.s32.totalorder %s16, 11
    %p74 = por %p72, %p73
    %p75 = scmp.ne.s32.totalorder %s64, %s65
    %p76 = scmp.eq.s32.totalorder %s16, 0
    %p77 = por %p75, %p76
    %p78 = scmp.ne.s32.totalorder %s64, %s65
    %p79 = scmp.eq.s32.totalorder %s17, 11
    %p80 = por %p78, %p79
    %p82 = scmp.ne.s32.totalorder %s65, %s81
    %p83 = scmp.eq.s32.totalorder %s17, 0
    %p84 = por %p82, %p83
    %s85 = ssub.s32 %s18, %s30
    %p86 = scmp.eq.s32.totalorder %s85, 0
    %s88 = sadd.s32 %s87, 1
    %s89 = scalar_select %p86, %s87, %s88
    %p92 = pneg %p86
    %p93 = scmp.eq.s32.totalorder %s11, 11
    %p94 = por %p92, %p93
    %p95 = scmp.ne.s32.totalorder %s87, %s90
    %p96 = scmp.eq.s32.totalorder %s11, 0
    %p97 = por %p95, %p96
    %p98 = scmp.ne.s32.totalorder %s87, %s90
    %p99 = scmp.eq.s32.totalorder %s16, 11
    %p100 = por %p98, %p99
    %p101 = scmp.ne.s32.totalorder %s90, %s91
    %p102 = scmp.eq.s32.totalorder %s16, 0
    %p103 = por %p101, %p102
    %p104 = scmp.ne.s32.totalorder %s90, %s91
    %p105 = scmp.eq.s32.totalorder %s17, 11
    %p106 = por %p104, %p105
    %p108 = scmp.ne.s32.totalorder %s91, %s107
    %p109 = scmp.eq.s32.totalorder %s17, 0
    %p110 = por %p108, %p109
    %s111 = ssub.s32 %s18, %s30
    %p112 = scmp.eq.s32.totalorder %s111, 0
    %s114 = sadd.s32 %s113, 1
    %s115 = scalar_select %p112, %s113, %s114
    %p118 = pneg %p112
    %p119 = scmp.eq.s32.totalorder %s11, 11
    %p120 = por %p118, %p119
    %p121 = scmp.ne.s32.totalorder %s113, %s116
    %p122 = scmp.eq.s32.totalorder %s11, 0
    %p123 = por %p121, %p122
    %p124 = scmp.ne.s32.totalorder %s113, %s116
    %p125 = scmp.eq.s32.totalorder %s16, 11
    %p126 = por %p124, %p125
    %p127 = scmp.ne.s32.totalorder %s116, %s117
    %p128 = scmp.eq.s32.totalorder %s16, 0
    %p129 = por %p127, %p128
    %p130 = scmp.ne.s32.totalorder %s116, %s117
    %p131 = scmp.eq.s32.totalorder %s17, 11
    %p132 = por %p130, %p131
    %p134 = scmp.ne.s32.totalorder %s117, %s133
    %p135 = scmp.eq.s32.totalorder %s17, 0
    %p136 = por %p134, %p135
    %s137 = ssub.s32 %s18, %s30
    %p138 = scmp.eq.s32.totalorder %s137, 0
    %s140 = sadd.s32 %s139, 1
    %s141 = scalar_select %p138, %s139, %s140
    %p144 = pneg %p138
    %p145 = scmp.eq.s32.totalorder %s11, 11
    %p146 = por %p144, %p145
    %p147 = scmp.ne.s32.totalorder %s139, %s142
    %p148 = scmp.eq.s32.totalorder %s11, 0
    %p149 = por %p147, %p148
    %p150 = scmp.ne.s32.totalorder %s139, %s142
    %p151 = scmp.eq.s32.totalorder %s16, 11
    %p152 = por %p150, %p151
    %p153 = scmp.ne.s32.totalorder %s142, %s143
    %p154 = scmp.eq.s32.totalorder %s16, 0
    %p155 = por %p153, %p154
    %p156 = scmp.ne.s32.totalorder %s142, %s143
    %p157 = scmp.eq.s32.totalorder %s17, 11
    %p158 = por %p156, %p157
    %p160 = scmp.ne.s32.totalorder %s143, %s159
    %p161 = scmp.eq.s32.totalorder %s17, 0
    %p162 = por %p160, %p161
    %s163 = ssub.s32 %s18, %s30
    %s164 = ssub.s32 %s19, %s26
    %s165 = sor.u32 %s163, %s164
    %p166 = scmp.eq.s32.totalorder %s165, 0
    %s168 = sadd.s32 %s167, 1
    %s169 = scalar_select %p166, %s167, %s168
    %p172 = pneg %p166
    %p173 = scmp.eq.s32.totalorder %s11, 11
    %p174 = por %p172, %p173
    %p175 = scmp.ne.s32.totalorder %s167, %s170
    %p176 = scmp.eq.s32.totalorder %s11, 0
    %p177 = por %p175, %p176
    %p178 = scmp.ne.s32.totalorder %s167, %s170
    %p179 = scmp.eq.s32.totalorder %s16, 11
    %p180 = por %p178, %p179
    %p181 = scmp.ne.s32.totalorder %s170, %s171
    %p182 = scmp.eq.s32.totalorder %s16, 0
    %p183 = por %p181, %p182
    %p184 = scmp.ne.s32.totalorder %s170, %s171
    %p185 = scmp.eq.s32.totalorder %s17, 11
    %p186 = por %p184, %p185
    %p188 = scmp.ne.s32.totalorder %s171, %s187
    %p189 = scmp.eq.s32.totalorder %s17, 0
    %p190 = por %p188, %p189
    %p191 = scmp.le.s32.totalorder 1, %s11
    %p192 = scmp.lt.s32.totalorder %s11, 13
    %p193 = pnand %p191, %p192
    %p194 = pneg %p193
    // Predicated region
    $region9: #{adapter_tuning_forward.1} parent=5 // pred_check
      _
    $region10: #{adapter_tuning_forward.1} parent=5 // pred_check_branch
      %196 = sbr.rel (%p193) target = $region12
    $region11: #{adapter_tuning_forward.1} parent=5 // pred_region
      %s197 = ssub.s32 %s11, 1
    $region12: #{adapter_tuning_forward.1} parent=5 // pred_fallthru
      _
    %p198 = scmp.lt.s32.totalorder %s11, 12
    // Predicated region
    $region13: #{adapter_tuning_forward.1} parent=5 // pred_check
      %p199 = pneg %p198
    $region14: #{adapter_tuning_forward.1} parent=5 // pred_check_branch
      %201 = sbr.rel (%p199) target = $region16
    $region15: #{adapter_tuning_forward.1} parent=5 // pred_region
      // Predicated region
      $region17: #{adapter_tuning_forward.1} parent=15 // pred_check
        %p202 = pneg %p45
      $region18: #{adapter_tuning_forward.1} parent=15 // pred_check_branch
        %204 = sbr.rel (%p202) target = $region20
      $region19: #{adapter_tuning_forward.1} parent=15 // pred_region
        %s205 = smul.u32 2, %s19
        %p206 = scmp.lt.s32.totalorder %s18, 11
        %s207 = scalar_select %p206, %s18, 11
        %p208 = scmp.lt.s32.totalorder %s205, 1
        %s209 = scalar_select %p208, %s205, 1
        %s210 = smul.addr %s209, 6
        %s211 = smul.addr %s207, 12
        %s212 = sadd.s32 %s210, %s211
        %s213 = smul.addr %s212, 8
        %s214 = scalar_lea.vmem %s0, %s213
        %s215 = smul.u32 2, %s19
      $region20: #{adapter_tuning_forward.1} parent=15 // pred_fallthru
        _
      // Predicated region
      $region21: #{adapter_tuning_forward.1} parent=15 // pred_check
        %p216 = pneg %p71
      $region22: #{adapter_tuning_forward.1} parent=15 // pred_check_branch
        %218 = sbr.rel (%p216) target = $region24
      $region23: #{adapter_tuning_forward.1} parent=15 // pred_region
        %p219 = scmp.lt.s32.totalorder %s18, 11
        %s220 = scalar_select %p219, %s18, 11
        %s221 = smul.addr %s220, 96
        %s222 = smul.addr %s221, 4
        %s223 = scalar_lea.vmem %s1, %s222
      $region24: #{adapter_tuning_forward.1} parent=15 // pred_fallthru
        _
      // Predicated region
      $region25: #{adapter_tuning_forward.1} parent=15 // pred_check
        %p224 = pneg %p97
      $region26: #{adapter_tuning_forward.1} parent=15 // pred_check_branch
        %226 = sbr.rel (%p224) target = $region28
      $region27: #{adapter_tuning_forward.1} parent=15 // pred_region
        %p227 = scmp.lt.s32.totalorder %s18, 11
        %s228 = scalar_select %p227, %s18, 11
        %s229 = scalar_lea.vmem %s2, %s228
      $region28: #{adapter_tuning_forward.1} parent=15 // pred_fallthru
        _
      // Predicated region
      $region29: #{adapter_tuning_forward.1} parent=15 // pred_check
        %p230 = pneg %p123
      $region30: #{adapter_tuning_forward.1} parent=15 // pred_check_branch
        %232 = sbr.rel (%p230) target = $region32
      $region31: #{adapter_tuning_forward.1} parent=15 // pred_region
        %p233 = scmp.lt.s32.totalorder %s18, 11
        %s234 = scalar_select %p233, %s18, 11
        %s235 = smul.addr %s234, 48
        %s236 = smul.addr %s235, 4
        %s237 = scalar_lea.vmem %s3, %s236
      $region32: #{adapter_tuning_forward.1} parent=15 // pred_fallthru
        _
      // Predicated region
      $region33: #{adapter_tuning_forward.1} parent=15 // pred_check
        %p238 = pneg %p149
      $region34: #{adapter_tuning_forward.1} parent=15 // pred_check_branch
        %240 = sbr.rel (%p238) target = $region36
      $region35: #{adapter_tuning_forward.1} parent=15 // pred_region
        %p241 = scmp.lt.s32.totalorder %s18, 11
        %s242 = scalar_select %p241, %s18, 11
        %s243 = smul.addr %s242, 6
        %s244 = scalar_lea.vmem %s4, %s243
      $region36: #{adapter_tuning_forward.1} parent=15 // pred_fallthru
        _
    $region16: #{adapter_tuning_forward.1} parent=5 // pred_fallthru
      _
    %p245 = scmp.le.s32.totalorder 1, %s11
    %p246 = scmp.lt.s32.totalorder %s11, 13
    %p247 = pnand %p245, %p246
    %p248 = pneg %p247
    // Predicated region
    $region37: #{adapter_tuning_forward.1} parent=5 // pred_check
      _
    $region38: #{adapter_tuning_forward.1} parent=5 // pred_check_branch
      %250 = sbr.rel (%p247) target = $region40
    $region39: #{adapter_tuning_forward.1} parent=5 // pred_region
      %s251 = ssub.s32 %s11, 1
      %s252 = smul.u32 2, %s21
      %p253 = scmp.lt.s32.totalorder %s20, 11
      %s254 = scalar_select %p253, %s20, 11
      %p255 = scmp.lt.s32.totalorder %s252, 1
      %s256 = scalar_select %p255, %s252, 1
      %s257 = smul.addr %s256, 6
      %s258 = smul.addr %s254, 12
      %s259 = sadd.s32 %s257, %s258
      %s260 = smul.addr %s259, 8
      %s261 = scalar_lea.vmem %s0, %s260
      %p262 = pneg %p51
      %p263 = pneg %p48
      %p264 = scmp.lt.s32.totalorder %s20, 11
      %s265 = scalar_select %p264, %s20, 11
      %s266 = smul.addr %s265, 96
      %s267 = smul.addr %s266, 4
      %s268 = scalar_lea.vmem %s1, %s267
      %p269 = pneg %p77
      %p270 = pneg %p74
      %p271 = scmp.lt.s32.totalorder %s20, 11
      %s272 = scalar_select %p271, %s20, 11
      %s273 = scalar_lea.vmem %s2, %s272
      %p274 = pneg %p103
      %p275 = pneg %p100
      %p276 = scmp.lt.s32.totalorder %s20, 11
      %s277 = scalar_select %p276, %s20, 11
      %s278 = smul.addr %s277, 48
      %s279 = smul.addr %s278, 4
      %s280 = scalar_lea.vmem %s3, %s279
      %p281 = pneg %p129
      %p282 = pneg %p126
      %p283 = scmp.lt.s32.totalorder %s20, 11
      %s284 = scalar_select %p283, %s20, 11
      %s285 = smul.addr %s284, 6
      %s286 = scalar_lea.vmem %s4, %s285
      %p287 = pneg %p155
      %p288 = pneg %p152
      %p289 = pneg %p183
      %p290 = pneg %p180
      %s291 = smul.u32 2, %s21
      %p292 = scmp.lt.s32.totalorder %s20, 11
      %s293 = scalar_select %p292, %s20, 11
      %p294 = scmp.lt.s32.totalorder %s291, 1
      %s295 = scalar_select %p294, %s291, 1
      %s296 = smul.addr %s295, 6
      %s297 = smul.addr %s293, 12
      %s298 = sadd.s32 %s296, %s297
      %s299 = smul.addr %s298, 8
      %s300 = scalar_lea.vmem %s5, %s299
      %s301 = smul.u32 2, %s21
      %p302 = scmp.lt.s32.totalorder %s20, 11
      %s303 = scalar_select %p302, %s20, 11
      %p304 = scmp.lt.s32.totalorder %s301, 1
      %s305 = scalar_select %p304, %s301, 1
      %s306 = smul.addr %s305, 6
      %s307 = smul.addr %s303, 12
      %s308 = sadd.s32 %s306, %s307
      %s309 = smul.addr %s308, 8
      %s310 = scalar_lea.vmem %s0, %s309
      %s311 = smul.u32 2, %s21
      %p312 = scmp.lt.s32.totalorder %s20, 11
      %s313 = scalar_select %p312, %s20, 11
      %s314 = smul.addr %s313, 96
      %s315 = smul.addr %s314, 4
      %s316 = scalar_lea.vmem %s1, %s315
      %p317 = scmp.lt.s32.totalorder %s20, 11
      %s318 = scalar_select %p317, %s20, 11
      %s319 = scalar_lea.vmem %s2, %s318
      %p320 = scmp.lt.s32.totalorder %s20, 11
      %s321 = scalar_select %p320, %s20, 11
      %s322 = smul.addr %s321, 48
      %s323 = smul.addr %s322, 4
      %s324 = scalar_lea.vmem %s3, %s323
      %p325 = scmp.lt.s32.totalorder %s20, 11
      %s326 = scalar_select %p325, %s20, 11
      %s327 = smul.addr %s326, 6
      %s328 = scalar_lea.vmem %s4, %s327
      %s329 = smul.u32 2, %s21
      %p330 = scmp.lt.s32.totalorder %s20, 11
      %s331 = scalar_select %p330, %s20, 11
      %p332 = scmp.lt.s32.totalorder %s329, 1
      %s333 = scalar_select %p332, %s329, 1
      %s334 = smul.addr %s333, 6
      %s335 = smul.addr %s331, 12
      %s336 = sadd.s32 %s334, %s335
      %s337 = smul.addr %s336, 8
      %s338 = scalar_lea.vmem %s5, %s337
      %s339 = smul.u32 2, %s21
      %v340 = vld [vmem:[%s310] sm:$0xff]
      %v341 = vld [vmem:[%s310 + $0x8] sm:$0xff]
      %v342 = vld [vmem:[%s310 + $0x10] sm:$0xff]
      %v343 = vld [vmem:[%s310 + $0x18] sm:$0xff]
      %v344 = vld [vmem:[%s310 + $0x20] sm:$0xff]
      %v345 = vld [vmem:[%s310 + $0x28] sm:$0xff]
      %v346 = vld [vmem:[%s310 + $0x30] sm:$0xff]
      %v347 = vld [vmem:[%s310 + $0x38] sm:$0xff]
      %v348 = vld [vmem:[%s310 + $0x40] sm:$0xff]
      %v349 = vld [vmem:[%s310 + $0x48] sm:$0xff]
      %v350 = vld [vmem:[%s310 + $0x50] sm:$0xff]
      %v351 = vld [vmem:[%s310 + $0x58] sm:$0xff]
      %v352 = vld [vmem:[%s316] sm:$0xf]
      %v353 = vld [vmem:[%s316 + $0x4] sm:$0xf]
      %v354 = vld [vmem:[%s316 + $0x8] sm:$0xf]
      %v355 = vld [vmem:[%s316 + $0xc] sm:$0xf]
      %v356 = vld [vmem:[%s316 + $0x10] sm:$0xf]
      %v357 = vld [vmem:[%s316 + $0x14] sm:$0xf]
      %v358 = vld [vmem:[%s316 + $0x18] sm:$0xf]
      %v359 = vld [vmem:[%s316 + $0x1c] sm:$0xf]
      %v360 = vld [vmem:[%s316 + $0x20] sm:$0xf]
      %v361 = vld [vmem:[%s316 + $0x24] sm:$0xf]
      %v362 = vld [vmem:[%s316 + $0x28] sm:$0xf]
      %v363 = vld [vmem:[%s316 + $0x2c] sm:$0xf]
      %v364 = vld [vmem:[%s316 + $0x30] sm:$0xf]
      %v365 = vld [vmem:[%s316 + $0x34] sm:$0xf]
      %v366 = vld [vmem:[%s316 + $0x38] sm:$0xf]
      %v367 = vld [vmem:[%s316 + $0x3c] sm:$0xf]
      %v368 = vld [vmem:[%s316 + $0x40] sm:$0xf]
      %v369 = vld [vmem:[%s316 + $0x44] sm:$0xf]
      %v370 = vld [vmem:[%s316 + $0x48] sm:$0xf]
      %v371 = vld [vmem:[%s316 + $0x4c] sm:$0xf]
      %v372 = vld [vmem:[%s316 + $0x50] sm:$0xf]
      %v373 = vld [vmem:[%s316 + $0x54] sm:$0xf]
      %v374 = vld [vmem:[%s316 + $0x58] sm:$0xf]
      %v375 = vld [vmem:[%s316 + $0x5c] sm:$0xf]
      %v376 = vld [vmem:[%s316 + $0x60] sm:$0xf]
      %v377 = vld [vmem:[%s316 + $0x64] sm:$0xf]
      %v378 = vld [vmem:[%s316 + $0x68] sm:$0xf]
      %v379 = vld [vmem:[%s316 + $0x6c] sm:$0xf]
      %v380 = vld [vmem:[%s316 + $0x70] sm:$0xf]
      %v381 = vld [vmem:[%s316 + $0x74] sm:$0xf]
      %v382 = vld [vmem:[%s316 + $0x78] sm:$0xf]
      %v383 = vld [vmem:[%s316 + $0x7c] sm:$0xf]
      %v384 = vld [vmem:[%s316 + $0x80] sm:$0xf]
      %v385 = vld [vmem:[%s316 + $0x84] sm:$0xf]
      %v386 = vld [vmem:[%s316 + $0x88] sm:$0xf]
      %v387 = vld [vmem:[%s316 + $0x8c] sm:$0xf]
      %v388 = vld [vmem:[%s316 + $0x90] sm:$0xf]
      %v389 = vld [vmem:[%s316 + $0x94] sm:$0xf]
      %v390 = vld [vmem:[%s316 + $0x98] sm:$0xf]
      %v391 = vld [vmem:[%s316 + $0x9c] sm:$0xf]
      %v392 = vld [vmem:[%s316 + $0xa0] sm:$0xf]
      %v393 = vld [vmem:[%s316 + $0xa4] sm:$0xf]
      %v394 = vld [vmem:[%s316 + $0xa8] sm:$0xf]
      %v395 = vld [vmem:[%s316 + $0xac] sm:$0xf]
      %v396 = vld [vmem:[%s316 + $0xb0] sm:$0xf]
      %v397 = vld [vmem:[%s316 + $0xb4] sm:$0xf]
      %v398 = vld [vmem:[%s316 + $0xb8] sm:$0xf]
      %v399 = vld [vmem:[%s316 + $0xbc] sm:$0xf]
      %v400 = vld [vmem:[%s316 + $0xc0] sm:$0xf]
      %v401 = vld [vmem:[%s316 + $0xc4] sm:$0xf]
      %v402 = vld [vmem:[%s316 + $0xc8] sm:$0xf]
      %v403 = vld [vmem:[%s316 + $0xcc] sm:$0xf]
      %v404 = vld [vmem:[%s316 + $0xd0] sm:$0xf]
      %v405 = vld [vmem:[%s316 + $0xd4] sm:$0xf]
      %v406 = vld [vmem:[%s316 + $0xd8] sm:$0xf]
      %v407 = vld [vmem:[%s316 + $0xdc] sm:$0xf]
      %v408 = vld [vmem:[%s316 + $0xe0] sm:$0xf]
      %v409 = vld [vmem:[%s316 + $0xe4] sm:$0xf]
      %v410 = vld [vmem:[%s316 + $0xe8] sm:$0xf]
      %v411 = vld [vmem:[%s316 + $0xec] sm:$0xf]
      %v412 = vld [vmem:[%s316 + $0xf0] sm:$0xf]
      %v413 = vld [vmem:[%s316 + $0xf4] sm:$0xf]
      %v414 = vld [vmem:[%s316 + $0xf8] sm:$0xf]
      %v415 = vld [vmem:[%s316 + $0xfc] sm:$0xf]
      %v416 = vld [vmem:[%s316 + $0x100] sm:$0xf]
      %v417 = vld [vmem:[%s316 + $0x104] sm:$0xf]
      %v418 = vld [vmem:[%s316 + $0x108] sm:$0xf]
      %v419 = vld [vmem:[%s316 + $0x10c] sm:$0xf]
      %v420 = vld [vmem:[%s316 + $0x110] sm:$0xf]
      %v421 = vld [vmem:[%s316 + $0x114] sm:$0xf]
      %v422 = vld [vmem:[%s316 + $0x118] sm:$0xf]
      %v423 = vld [vmem:[%s316 + $0x11c] sm:$0xf]
      %v424 = vld [vmem:[%s316 + $0x120] sm:$0xf]
      %v425 = vld [vmem:[%s316 + $0x124] sm:$0xf]
      %v426 = vld [vmem:[%s316 + $0x128] sm:$0xf]
      %v427 = vld [vmem:[%s316 + $0x12c] sm:$0xf]
      %v428 = vld [vmem:[%s316 + $0x130] sm:$0xf]
      %v429 = vld [vmem:[%s316 + $0x134] sm:$0xf]
      %v430 = vld [vmem:[%s316 + $0x138] sm:$0xf]
      %v431 = vld [vmem:[%s316 + $0x13c] sm:$0xf]
      %v432 = vld [vmem:[%s316 + $0x140] sm:$0xf]
      %v433 = vld [vmem:[%s316 + $0x144] sm:$0xf]
      %v434 = vld [vmem:[%s316 + $0x148] sm:$0xf]
      %v435 = vld [vmem:[%s316 + $0x14c] sm:$0xf]
      %v436 = vld [vmem:[%s316 + $0x150] sm:$0xf]
      %v437 = vld [vmem:[%s316 + $0x154] sm:$0xf]
      %v438 = vld [vmem:[%s316 + $0x158] sm:$0xf]
      %v439 = vld [vmem:[%s316 + $0x15c] sm:$0xf]
      %v440 = vld [vmem:[%s316 + $0x160] sm:$0xf]
      %v441 = vld [vmem:[%s316 + $0x164] sm:$0xf]
      %v442 = vld [vmem:[%s316 + $0x168] sm:$0xf]
      %v443 = vld [vmem:[%s316 + $0x16c] sm:$0xf]
      %v444 = vld [vmem:[%s316 + $0x170] sm:$0xf]
      %v445 = vld [vmem:[%s316 + $0x174] sm:$0xf]
      %v446 = vld [vmem:[%s316 + $0x178] sm:$0xf]
      %v447 = vld [vmem:[%s316 + $0x17c] sm:$0xf]
      %v448 = vunpack.c.l.bf16 %v352
      %v449 = vunpack.c.l.bf16 %v353
      %v450 = vunpack.c.l.bf16 %v354
      %v451 = vunpack.c.l.bf16 %v355
      %v452 = vunpack.c.l.bf16 %v356
      %v453 = vunpack.c.l.bf16 %v357
      %v454 = vunpack.c.l.bf16 %v358
      %v455 = vunpack.c.l.bf16 %v359
      %v456 = vunpack.c.l.bf16 %v360
      %v457 = vunpack.c.l.bf16 %v361
      %v458 = vunpack.c.l.bf16 %v362
      %v459 = vunpack.c.l.bf16 %v363
      %v460 = vunpack.c.l.bf16 %v364
      %v461 = vunpack.c.l.bf16 %v365
      %v462 = vunpack.c.l.bf16 %v366
      %v463 = vunpack.c.l.bf16 %v367
      %v464 = vunpack.c.l.bf16 %v368
      %v465 = vunpack.c.l.bf16 %v369
      %v466 = vunpack.c.l.bf16 %v370
      %v467 = vunpack.c.l.bf16 %v371
      %v468 = vunpack.c.l.bf16 %v372
      %v469 = vunpack.c.l.bf16 %v373
      %v470 = vunpack.c.l.bf16 %v374
      %v471 = vunpack.c.l.bf16 %v375
      %v472 = vunpack.c.l.bf16 %v376
      %v473 = vunpack.c.l.bf16 %v377
      %v474 = vunpack.c.l.bf16 %v378
      %v475 = vunpack.c.l.bf16 %v379
      %v476 = vunpack.c.l.bf16 %v380
      %v477 = vunpack.c.l.bf16 %v381
      %v478 = vunpack.c.l.bf16 %v382
      %v479 = vunpack.c.l.bf16 %v383
      %v480 = vunpack.c.l.bf16 %v384
      %v481 = vunpack.c.l.bf16 %v385
      %v482 = vunpack.c.l.bf16 %v386
      %v483 = vunpack.c.l.bf16 %v387
      %v484 = vunpack.c.l.bf16 %v388
      %v485 = vunpack.c.l.bf16 %v389
      %v486 = vunpack.c.l.bf16 %v390
      %v487 = vunpack.c.l.bf16 %v391
      %v488 = vunpack.c.l.bf16 %v392
      %v489 = vunpack.c.l.bf16 %v393
      %v490 = vunpack.c.l.bf16 %v394
      %v491 = vunpack.c.l.bf16 %v395
      %v492 = vunpack.c.l.bf16 %v396
      %v493 = vunpack.c.l.bf16 %v397
      %v494 = vunpack.c.l.bf16 %v398
      %v495 = vunpack.c.l.bf16 %v399
      %v496 = vunpack.c.l.bf16 %v400
      %v497 = vunpack.c.l.bf16 %v401
      %v498 = vunpack.c.l.bf16 %v402
      %v499 = vunpack.c.l.bf16 %v403
      %v500 = vunpack.c.l.bf16 %v404
      %v501 = vunpack.c.l.bf16 %v405
      %v502 = vunpack.c.l.bf16 %v406
      %v503 = vunpack.c.l.bf16 %v407
      %v504 = vunpack.c.l.bf16 %v408
      %v505 = vunpack.c.l.bf16 %v409
      %v506 = vunpack.c.l.bf16 %v410
      %v507 = vunpack.c.l.bf16 %v411
      %v508 = vunpack.c.l.bf16 %v412
      %v509 = vunpack.c.l.bf16 %v413
      %v510 = vunpack.c.l.bf16 %v414
      %v511 = vunpack.c.l.bf16 %v415
      %v512 = vunpack.c.l.bf16 %v416
      %v513 = vunpack.c.l.bf16 %v417
      %v514 = vunpack.c.l.bf16 %v418
      %v515 = vunpack.c.l.bf16 %v419
      %v516 = vunpack.c.l.bf16 %v420
      %v517 = vunpack.c.l.bf16 %v421
      %v518 = vunpack.c.l.bf16 %v422
      %v519 = vunpack.c.l.bf16 %v423
      %v520 = vunpack.c.l.bf16 %v424
      %v521 = vunpack.c.l.bf16 %v425
      %v522 = vunpack.c.l.bf16 %v426
      %v523 = vunpack.c.l.bf16 %v427
      %v524 = vunpack.c.l.bf16 %v428
      %v525 = vunpack.c.l.bf16 %v429
      %v526 = vunpack.c.l.bf16 %v430
      %v527 = vunpack.c.l.bf16 %v431
      %v528 = vunpack.c.l.bf16 %v432
      %v529 = vunpack.c.l.bf16 %v433
      %v530 = vunpack.c.l.bf16 %v434
      %v531 = vunpack.c.l.bf16 %v435
      %v532 = vunpack.c.l.bf16 %v436
      %v533 = vunpack.c.l.bf16 %v437
      %v534 = vunpack.c.l.bf16 %v438
      %v535 = vunpack.c.l.bf16 %v439
      %v536 = vunpack.c.l.bf16 %v440
      %v537 = vunpack.c.l.bf16 %v441
      %v538 = vunpack.c.l.bf16 %v442
      %v539 = vunpack.c.l.bf16 %v443
      %v540 = vunpack.c.l.bf16 %v444
      %v541 = vunpack.c.l.bf16 %v445
      %v542 = vunpack.c.l.bf16 %v446
      %v543 = vunpack.c.l.bf16 %v447
      %v544 = vld [vmem:[%s324] sm:$0xff]
      %v545 = vld [vmem:[%s324 + $0x8] sm:$0xff]
      %v546 = vld [vmem:[%s324 + $0x10] sm:$0xff]
      %v547 = vld [vmem:[%s324 + $0x18] sm:$0xff]
      %v548 = vld [vmem:[%s324 + $0x20] sm:$0xff]
      %v549 = vld [vmem:[%s324 + $0x28] sm:$0xff]
      %v550 = vld [vmem:[%s324 + $0x30] sm:$0xff]
      %v551 = vld [vmem:[%s324 + $0x38] sm:$0xff]
      %v552 = vld [vmem:[%s324 + $0x40] sm:$0xff]
      %v553 = vld [vmem:[%s324 + $0x48] sm:$0xff]
      %v554 = vld [vmem:[%s324 + $0x50] sm:$0xff]
      %v555 = vld [vmem:[%s324 + $0x58] sm:$0xff]
      %v556 = vld [vmem:[%s324 + $0x60] sm:$0xff]
      %v557 = vld [vmem:[%s324 + $0x68] sm:$0xff]
      %v558 = vld [vmem:[%s324 + $0x70] sm:$0xff]
      %v559 = vld [vmem:[%s324 + $0x78] sm:$0xff]
      %v560 = vld [vmem:[%s324 + $0x80] sm:$0xff]
      %v561 = vld [vmem:[%s324 + $0x88] sm:$0xff]
      %v562 = vld [vmem:[%s324 + $0x90] sm:$0xff]
      %v563 = vld [vmem:[%s324 + $0x98] sm:$0xff]
      %v564 = vld [vmem:[%s324 + $0xa0] sm:$0xff]
      %v565 = vld [vmem:[%s324 + $0xa8] sm:$0xff]
      %v566 = vld [vmem:[%s324 + $0xb0] sm:$0xff]
      %v567 = vld [vmem:[%s324 + $0xb8] sm:$0xff]
      %v568 = vunpack.c.l.bf16 %v544
      %v569 = vunpack.c.h.bf16 %v544
      %v570 = vunpack.c.l.bf16 %v545
      %v571 = vunpack.c.h.bf16 %v545
      %v572 = vunpack.c.l.bf16 %v546
      %v573 = vunpack.c.h.bf16 %v546
      %v574 = vunpack.c.l.bf16 %v547
      %v575 = vunpack.c.h.bf16 %v547
      %v576 = vunpack.c.l.bf16 %v548
      %v577 = vunpack.c.h.bf16 %v548
      %v578 = vunpack.c.l.bf16 %v549
      %v579 = vunpack.c.h.bf16 %v549
      %v580 = vunpack.c.l.bf16 %v550
      %v581 = vunpack.c.h.bf16 %v550
      %v582 = vunpack.c.l.bf16 %v551
      %v583 = vunpack.c.h.bf16 %v551
      %v584 = vunpack.c.l.bf16 %v552
      %v585 = vunpack.c.h.bf16 %v552
      %v586 = vunpack.c.l.bf16 %v553
      %v587 = vunpack.c.h.bf16 %v553
      %v588 = vunpack.c.l.bf16 %v554
      %v589 = vunpack.c.h.bf16 %v554
      %v590 = vunpack.c.l.bf16 %v555
      %v591 = vunpack.c.h.bf16 %v555
      %v592 = vunpack.c.l.bf16 %v556
      %v593 = vunpack.c.h.bf16 %v556
      %v594 = vunpack.c.l.bf16 %v557
      %v595 = vunpack.c.h.bf16 %v557
      %v596 = vunpack.c.l.bf16 %v558
      %v597 = vunpack.c.h.bf16 %v558
      %v598 = vunpack.c.l.bf16 %v559
      %v599 = vunpack.c.h.bf16 %v559
      %v600 = vunpack.c.l.bf16 %v560
      %v601 = vunpack.c.h.bf16 %v560
      %v602 = vunpack.c.l.bf16 %v561
      %v603 = vunpack.c.h.bf16 %v561
      %v604 = vunpack.c.l.bf16 %v562
      %v605 = vunpack.c.h.bf16 %v562
      %v606 = vunpack.c.l.bf16 %v563
      %v607 = vunpack.c.h.bf16 %v563
      %v608 = vunpack.c.l.bf16 %v564
      %v609 = vunpack.c.h.bf16 %v564
      %v610 = vunpack.c.l.bf16 %v565
      %v611 = vunpack.c.h.bf16 %v565
      %v612 = vunpack.c.l.bf16 %v566
      %v613 = vunpack.c.h.bf16 %v566
      %v614 = vunpack.c.l.bf16 %v567
      %v615 = vunpack.c.h.bf16 %v567
      %v616 = vld [vmem:[%s319] sm:$0x1]
      %v618 = vlaneseq
      %v619 = vshrl.u32 %v618, 7
      %v620 = vsub.s32 0, %v619
      %v621 = vrot.slane %v616, %v620
      %623 = vmatprep.subr.mxu0 0.0
      %624 = vmatpush1.msra.mxu0 %v448
      %625 = vmatprep.subr.mxu0 0.0
      %626 = vmatpush1.msra.mxu0 %v449
      %627 = vmatprep.subr.mxu0 0.0
      %628 = vmatpush1.msra.mxu0 %v450
      %629 = vmatprep.subr.mxu0 0.0
      %630 = vmatpush1.msra.mxu0 %v451
      %631 = vmatprep.subr.mxu0 0.0
      %632 = vmatpush1.msra.mxu0 %v452
      %633 = vmatprep.subr.mxu0 0.0
      %634 = vmatpush1.msra.mxu0 %v453
      %635 = vmatprep.subr.mxu0 0.0
      %636 = vmatpush1.msra.mxu0 %v454
      %637 = vmatprep.subr.mxu0 0.0
      %638 = vmatpush1.msra.mxu0 %v455
      %639 = vmatprep.subr.mxu0 0.0
      %640 = vmatpush1.msra.mxu0 %v456
      %641 = vmatprep.subr.mxu0 0.0
      %642 = vmatpush1.msra.mxu0 %v457
      %643 = vmatprep.subr.mxu0 0.0
      %644 = vmatpush1.msra.mxu0 %v458
      %645 = vmatprep.subr.mxu0 0.0
      %646 = vmatpush1.msra.mxu0 %v459
      %647 = vmatprep.subr.mxu0 0.0
      %648 = vmatpush1.msra.mxu0 %v460
      %649 = vmatprep.subr.mxu0 0.0
      %650 = vmatpush1.msra.mxu0 %v461
      %651 = vmatprep.subr.mxu0 0.0
      %652 = vmatpush1.msra.mxu0 %v462
      %653 = vmatprep.subr.mxu0 0.0
      %654 = vmatpush1.msra.mxu0 %v463
      %655 = vmatprep.subr.mxu0 0.0
      %656 = vmatpush1.msra.mxu0 %v464
      %657 = vmatprep.subr.mxu0 0.0
      %658 = vmatpush1.msra.mxu0 %v465
      %659 = vmatprep.subr.mxu0 0.0
      %660 = vmatpush1.msra.mxu0 %v466
      %661 = vmatprep.subr.mxu0 0.0
      %662 = vmatpush1.msra.mxu0 %v467
      %663 = vmatprep.subr.mxu0 0.0
      %664 = vmatpush1.msra.mxu0 %v468
      %665 = vmatprep.subr.mxu0 0.0
      %666 = vmatpush1.msra.mxu0 %v469
      %667 = vmatprep.subr.mxu0 0.0
      %668 = vmatpush1.msra.mxu0 %v470
      %669 = vmatprep.subr.mxu0 0.0
      %670 = vmatpush1.msra.mxu0 %v471
      %671 = vmatprep.subr.mxu0 0.0
      %672 = vmatpush1.msra.mxu0 %v472
      %673 = vmatprep.subr.mxu0 0.0
      %674 = vmatpush1.msra.mxu0 %v473
      %675 = vmatprep.subr.mxu0 0.0
      %676 = vmatpush1.msra.mxu0 %v474
      %677 = vmatprep.subr.mxu0 0.0
      %678 = vmatpush1.msra.mxu0 %v475
      %679 = vmatprep.subr.mxu0 0.0
      %680 = vmatpush1.msra.mxu0 %v476
      %681 = vmatprep.subr.mxu0 0.0
      %682 = vmatpush1.msra.mxu0 %v477
      %683 = vmatprep.subr.mxu0 0.0
      %684 = vmatpush1.msra.mxu0 %v478
      %685 = vmatprep.subr.mxu0 0.0
      %686 = vmatpush1.msra.mxu0 %v479
      %687 = vmatprep.mubr.f32.mxu0 %v341
      %688 = vmatmul.mubr.f32.gmra.mrb[0].mxu0 %v340
      %v689 = vpop.f32.mrb[0].mxu0
      %v690 = vadd.f32 %v621, %v689
      %v691 = vpop.f32.mrb[0].mxu0
      %692 = vmatprep.mubr.f32.mxu0 %v347
      %693 = vmatmul.mubr.f32.gmra.mrb[0].mxu0 %v346
      %v694 = vpop.f32.mrb[0].mxu0
      %v695 = vadd.f32 %v621, %v694
      %v696 = vpop.f32.mrb[0].mxu0
      %697 = vdwg.mxu0
      %698 = vmatprep.subr.mxu0 0.0
      %699 = vmatpush1.msra.mxu0 %v480
      %700 = vmatprep.subr.mxu0 0.0
      %701 = vmatpush1.msra.mxu0 %v481
      %702 = vmatprep.subr.mxu0 0.0
      %703 = vmatpush1.msra.mxu0 %v482
      %704 = vmatprep.subr.mxu0 0.0
      %705 = vmatpush1.msra.mxu0 %v483
      %706 = vmatprep.subr.mxu0 0.0
      %707 = vmatpush1.msra.mxu0 %v484
      %708 = vmatprep.subr.mxu0 0.0
      %709 = vmatpush1.msra.mxu0 %v485
      %710 = vmatprep.subr.mxu0 0.0
      %711 = vmatpush1.msra.mxu0 %v486
      %712 = vmatprep.subr.mxu0 0.0
      %713 = vmatpush1.msra.mxu0 %v487
      %714 = vmatprep.subr.mxu0 0.0
      %715 = vmatpush1.msra.mxu0 %v488
      %716 = vmatprep.subr.mxu0 0.0
      %717 = vmatpush1.msra.mxu0 %v489
      %718 = vmatprep.subr.mxu0 0.0
      %719 = vmatpush1.msra.mxu0 %v490
      %720 = vmatprep.subr.mxu0 0.0
      %721 = vmatpush1.msra.mxu0 %v491
      %722 = vmatprep.subr.mxu0 0.0
      %723 = vmatpush1.msra.mxu0 %v492
      %724 = vmatprep.subr.mxu0 0.0
      %725 = vmatpush1.msra.mxu0 %v493
      %726 = vmatprep.subr.mxu0 0.0
      %727 = vmatpush1.msra.mxu0 %v494
      %728 = vmatprep.subr.mxu0 0.0
      %729 = vmatpush1.msra.mxu0 %v495
      %730 = vmatprep.subr.mxu0 0.0
      %731 = vmatpush1.msra.mxu0 %v496
      %732 = vmatprep.subr.mxu0 0.0
      %733 = vmatpush1.msra.mxu0 %v497
      %734 = vmatprep.subr.mxu0 0.0
      %735 = vmatpush1.msra.mxu0 %v498
      %736 = vmatprep.subr.mxu0 0.0
      %737 = vmatpush1.msra.mxu0 %v499
      %738 = vmatprep.subr.mxu0 0.0
      %739 = vmatpush1.msra.mxu0 %v500
      %740 = vmatprep.subr.mxu0 0.0
      %741 = vmatpush1.msra.mxu0 %v501
      %742 = vmatprep.subr.mxu0 0.0
      %743 = vmatpush1.msra.mxu0 %v502
      %744 = vmatprep.subr.mxu0 0.0
      %745 = vmatpush1.msra.mxu0 %v503
      %746 = vmatprep.subr.mxu0 0.0
      %747 = vmatpush1.msra.mxu0 %v504
      %748 = vmatprep.subr.mxu0 0.0
      %749 = vmatpush1.msra.mxu0 %v505
      %750 = vmatprep.subr.mxu0 0.0
      %751 = vmatpush1.msra.mxu0 %v506
      %752 = vmatprep.subr.mxu0 0.0
      %753 = vmatpush1.msra.mxu0 %v507
      %754 = vmatprep.subr.mxu0 0.0
      %755 = vmatpush1.msra.mxu0 %v508
      %756 = vmatprep.subr.mxu0 0.0
      %757 = vmatpush1.msra.mxu0 %v509
      %758 = vmatprep.subr.mxu0 0.0
      %759 = vmatpush1.msra.mxu0 %v510
      %760 = vmatprep.subr.mxu0 0.0
      %761 = vmatpush1.msra.mxu0 %v511
      %762 = vmatprep.mubr.f32.mxu0 %v343
      %763 = vmatmul.mubr.f32.gmra.mrb[0].mxu0 %v342
      %v764 = vpop.f32.mrb[0].mxu0
      %v765 = vadd.f32 %v690, %v764
      %v766 = vpop.f32.mrb[0].mxu0
      %767 = vmatprep.mubr.f32.mxu0 %v349
      %768 = vmatmul.mubr.f32.gmra.mrb[0].mxu0 %v348
      %v769 = vpop.f32.mrb[0].mxu0
      %v770 = vadd.f32 %v695, %v769
      %v771 = vpop.f32.mrb[0].mxu0
      %772 = vdwg.mxu0
      %773 = vmatprep.subr.mxu0 0.0
      %774 = vmatpush1.msra.mxu0 %v512
      %775 = vmatprep.subr.mxu0 0.0
      %776 = vmatpush1.msra.mxu0 %v513
      %777 = vmatprep.subr.mxu0 0.0
      %778 = vmatpush1.msra.mxu0 %v514
      %779 = vmatprep.subr.mxu0 0.0
      %780 = vmatpush1.msra.mxu0 %v515
      %781 = vmatprep.subr.mxu0 0.0
      %782 = vmatpush1.msra.mxu0 %v516
      %783 = vmatprep.subr.mxu0 0.0
      %784 = vmatpush1.msra.mxu0 %v517
      %785 = vmatprep.subr.mxu0 0.0
      %786 = vmatpush1.msra.mxu0 %v518
      %787 = vmatprep.subr.mxu0 0.0
      %788 = vmatpush1.msra.mxu0 %v519
      %789 = vmatprep.subr.mxu0 0.0
      %790 = vmatpush1.msra.mxu0 %v520
      %791 = vmatprep.subr.mxu0 0.0
      %792 = vmatpush1.msra.mxu0 %v521
      %793 = vmatprep.subr.mxu0 0.0
      %794 = vmatpush1.msra.mxu0 %v522
      %795 = vmatprep.subr.mxu0 0.0
      %796 = vmatpush1.msra.mxu0 %v523
      %797 = vmatprep.subr.mxu0 0.0
      %798 = vmatpush1.msra.mxu0 %v524
      %799 = vmatprep.subr.mxu0 0.0
      %800 = vmatpush1.msra.mxu0 %v525
      %801 = vmatprep.subr.mxu0 0.0
      %802 = vmatpush1.msra.mxu0 %v526
      %803 = vmatprep.subr.mxu0 0.0
      %804 = vmatpush1.msra.mxu0 %v527
      %805 = vmatprep.subr.mxu0 0.0
      %806 = vmatpush1.msra.mxu0 %v528
      %807 = vmatprep.subr.mxu0 0.0
      %808 = vmatpush1.msra.mxu0 %v529
      %809 = vmatprep.subr.mxu0 0.0
      %810 = vmatpush1.msra.mxu0 %v530
      %811 = vmatprep.subr.mxu0 0.0
      %812 = vmatpush1.msra.mxu0 %v531
      %813 = vmatprep.subr.mxu0 0.0
      %814 = vmatpush1.msra.mxu0 %v532
      %815 = vmatprep.subr.mxu0 0.0
      %816 = vmatpush1.msra.mxu0 %v533
      %817 = vmatprep.subr.mxu0 0.0
      %818 = vmatpush1.msra.mxu0 %v534
      %819 = vmatprep.subr.mxu0 0.0
      %820 = vmatpush1.msra.mxu0 %v535
      %821 = vmatprep.subr.mxu0 0.0
      %822 = vmatpush1.msra.mxu0 %v536
      %823 = vmatprep.subr.mxu0 0.0
      %824 = vmatpush1.msra.mxu0 %v537
      %825 = vmatprep.subr.mxu0 0.0
      %826 = vmatpush1.msra.mxu0 %v538
      %827 = vmatprep.subr.mxu0 0.0
      %828 = vmatpush1.msra.mxu0 %v539
      %829 = vmatprep.subr.mxu0 0.0
      %830 = vmatpush1.msra.mxu0 %v540
      %831 = vmatprep.subr.mxu0 0.0
      %832 = vmatpush1.msra.mxu0 %v541
      %833 = vmatprep.subr.mxu0 0.0
      %834 = vmatpush1.msra.mxu0 %v542
      %835 = vmatprep.subr.mxu0 0.0
      %836 = vmatpush1.msra.mxu0 %v543
      %837 = vmatprep.mubr.f32.mxu0 %v345
      %838 = vmatmul.mubr.f32.gmra.mrb[0].mxu0 %v344
      %v839 = vpop.f32.mrb[0].mxu0
      %v840 = vadd.f32 %v765, %v839
      %v841 = vpop.f32.mrb[0].mxu0
      %842 = vmatprep.mubr.f32.mxu0 %v351
      %843 = vmatmul.mubr.f32.gmra.mrb[0].mxu0 %v350
      %v844 = vpop.f32.mrb[0].mxu0
      %v845 = vadd.f32 %v770, %v844
      %v846 = vpop.f32.mrb[0].mxu0
      %847 = vdwg.mxu0
      %v848 = vmax.f32 %v840, 0.0
      %v849 = vmax.f32 %v845, 0.0
      %v850 = vld [vmem:[%s328] sm:$0x3f]
      %v852 = vlaneseq
      %v853 = vshrl.u32 %v852, 7
      %v854 = vsub.s32 0, %v853
      %v855 = vrot.slane %v850, %v854
      %v856 = vlaneseq
      %v857 = vshrl.u32 %v856, 7
      %v858 = vsub.s32 1, %v857
      %v859 = vrot.slane %v850, %v858
      %v860 = vlaneseq
      %v861 = vshrl.u32 %v860, 7
      %v862 = vsub.s32 2, %v861
      %v863 = vrot.slane %v850, %v862
      %v864 = vlaneseq
      %v865 = vshrl.u32 %v864, 7
      %v866 = vsub.s32 3, %v865
      %v867 = vrot.slane %v850, %v866
      %v868 = vlaneseq
      %v869 = vshrl.u32 %v868, 7
      %v870 = vsub.s32 4, %v869
      %v871 = vrot.slane %v850, %v870
      %v872 = vlaneseq
      %v873 = vshrl.u32 %v872, 7
      %v874 = vsub.s32 5, %v873
      %v875 = vrot.slane %v850, %v874
      %vm882 = vcmask 523264
      %v884 = vsel %vm882, %v848, 0
      %v887 = vsel %vm882, %v849, 0
      %889 = vmatprep.subr.mxu0 %v569
      %890 = vmatpush1.msra.mxu0 %v568
      %891 = vmatprep.subr.mxu0 %v575
      %892 = vmatpush1.msra.mxu0 %v574
      %893 = vmatprep.subr.mxu0 %v581
      %894 = vmatpush1.msra.mxu0 %v580
      %895 = vmatprep.subr.mxu0 %v587
      %896 = vmatpush1.msra.mxu0 %v586
      %897 = vmatprep.subr.mxu0 %v593
      %898 = vmatpush1.msra.mxu0 %v592
      %899 = vmatprep.subr.mxu0 %v599
      %900 = vmatpush1.msra.mxu0 %v598
      %901 = vmatprep.subr.mxu0 %v605
      %902 = vmatpush1.msra.mxu0 %v604
      %903 = vmatprep.subr.mxu0 %v611
      %904 = vmatpush1.msra.mxu0 %v610
      %905 = vmatprep.subr.mxu0 0.0
      %906 = vmatpush1.msra.mxu0 0.0
      %907 = vmatprep.subr.mxu0 0.0
      %908 = vmatpush1.msra.mxu0 0.0
      %909 = vmatprep.subr.mxu0 0.0
      %910 = vmatpush1.msra.mxu0 0.0
      %911 = vmatprep.subr.mxu0 0.0
      %912 = vmatpush1.msra.mxu0 0.0
      %913 = vmatprep.subr.mxu0 0.0
      %914 = vmatpush1.msra.mxu0 0.0
      %915 = vmatprep.subr.mxu0 0.0
      %916 = vmatpush1.msra.mxu0 0.0
      %917 = vmatprep.subr.mxu0 0.0
      %918 = vmatpush1.msra.mxu0 0.0
      %919 = vmatprep.subr.mxu0 0.0
      %920 = vmatpush1.msra.mxu0 0.0
      %921 = vmatprep.subr.mxu0 0.0
      %922 = vmatpush1.msra.mxu0 0.0
      %923 = vmatprep.subr.mxu0 0.0
      %924 = vmatpush1.msra.mxu0 0.0
      %925 = vmatprep.subr.mxu0 0.0
      %926 = vmatpush1.msra.mxu0 0.0
      %927 = vmatprep.subr.mxu0 0.0
      %928 = vmatpush1.msra.mxu0 0.0
      %929 = vmatprep.subr.mxu0 0.0
      %930 = vmatpush1.msra.mxu0 0.0
      %931 = vmatprep.subr.mxu0 0.0
      %932 = vmatpush1.msra.mxu0 0.0
      %933 = vmatprep.subr.mxu0 0.0
      %934 = vmatpush1.msra.mxu0 0.0
      %935 = vmatprep.subr.mxu0 0.0
      %936 = vmatpush1.msra.mxu0 0.0
      %937 = vmatprep.subr.mxu0 0.0
      %938 = vmatpush1.msra.mxu0 0.0
      %939 = vmatprep.subr.mxu0 0.0
      %940 = vmatpush1.msra.mxu0 0.0
      %941 = vmatprep.subr.mxu0 0.0
      %942 = vmatpush1.msra.mxu0 0.0
      %943 = vmatprep.subr.mxu0 0.0
      %944 = vmatpush1.msra.mxu0 0.0
      %945 = vmatprep.subr.mxu0 0.0
      %946 = vmatpush1.msra.mxu0 0.0
      %947 = vmatprep.subr.mxu0 0.0
      %948 = vmatpush1.msra.mxu0 0.0
      %949 = vmatprep.subr.mxu0 0.0
      %950 = vmatpush1.msra.mxu0 0.0
      %951 = vmatprep.subr.mxu0 0.0
      %952 = vmatpush1.msra.mxu0 0.0
      %953 = vmatprep.mubr.f32.mxu0 0.0
      %954 = vmatmul.mubr.f32.gmra.mrb[0].mxu0 %v884
      %v955 = vpop.f32.mrb[0].mxu0
      %v956 = vadd.f32 %v855, %v955
      %v957 = vpop.f32.mrb[0].mxu0
      %v958 = vadd.f32 %v859, %v957
      %959 = vmatprep.mubr.f32.mxu0 0.0
      %960 = vmatmul.mubr.f32.gmra.mrb[0].mxu0 %v887
      %v961 = vpop.f32.mrb[0].mxu0
      %v962 = vadd.f32 %v855, %v961
      %v963 = vpop.f32.mrb[0].mxu0
      %v964 = vadd.f32 %v859, %v963
      %965 = vdwg.mxu0
      %966 = vmatprep.subr.mxu0 %v571
      %967 = vmatpush1.msra.mxu0 %v570
      %968 = vmatprep.subr.mxu0 %v577
      %969 = vmatpush1.msra.mxu0 %v576
      %970 = vmatprep.subr.mxu0 %v583
      %971 = vmatpush1.msra.mxu0 %v582
      %972 = vmatprep.subr.mxu0 %v589
      %973 = vmatpush1.msra.mxu0 %v588
      %974 = vmatprep.subr.mxu0 %v595
      %975 = vmatpush1.msra.mxu0 %v594
      %976 = vmatprep.subr.mxu0 %v601
      %977 = vmatpush1.msra.mxu0 %v600
      %978 = vmatprep.subr.mxu0 %v607
      %979 = vmatpush1.msra.mxu0 %v606
      %980 = vmatprep.subr.mxu0 %v613
      %981 = vmatpush1.msra.mxu0 %v612
      %982 = vmatprep.subr.mxu0 0.0
      %983 = vmatpush1.msra.mxu0 0.0
      %984 = vmatprep.subr.mxu0 0.0
      %985 = vmatpush1.msra.mxu0 0.0
      %986 = vmatprep.subr.mxu0 0.0
      %987 = vmatpush1.msra.mxu0 0.0
      %988 = vmatprep.subr.mxu0 0.0
      %989 = vmatpush1.msra.mxu0 0.0
      %990 = vmatprep.subr.mxu0 0.0
      %991 = vmatpush1.msra.mxu0 0.0
      %992 = vmatprep.subr.mxu0 0.0
      %993 = vmatpush1.msra.mxu0 0.0
      %994 = vmatprep.subr.mxu0 0.0
      %995 = vmatpush1.msra.mxu0 0.0
      %996 = vmatprep.subr.mxu0 0.0
      %997 = vmatpush1.msra.mxu0 0.0
      %998 = vmatprep.subr.mxu0 0.0
      %999 = vmatpush1.msra.mxu0 0.0
      %1000 = vmatprep.subr.mxu0 0.0
      %1001 = vmatpush1.msra.mxu0 0.0
      %1002 = vmatprep.subr.mxu0 0.0
      %1003 = vmatpush1.msra.mxu0 0.0
      %1004 = vmatprep.subr.mxu0 0.0
      %1005 = vmatpush1.msra.mxu0 0.0
      %1006 = vmatprep.subr.mxu0 0.0
      %1007 = vmatpush1.msra.mxu0 0.0
      %1008 = vmatprep.subr.mxu0 0.0
      %1009 = vmatpush1.msra.mxu0 0.0
      %1010 = vmatprep.subr.mxu0 0.0
      %1011 = vmatpush1.msra.mxu0 0.0
      %1012 = vmatprep.subr.mxu0 0.0
      %1013 = vmatpush1.msra.mxu0 0.0
      %1014 = vmatprep.subr.mxu0 0.0
      %1015 = vmatpush1.msra.mxu0 0.0
      %1016 = vmatprep.subr.mxu0 0.0
      %1017 = vmatpush1.msra.mxu0 0.0
      %1018 = vmatprep.subr.mxu0 0.0
      %1019 = vmatpush1.msra.mxu0 0.0
      %1020 = vmatprep.subr.mxu0 0.0
      %1021 = vmatpush1.msra.mxu0 0.0
      %1022 = vmatprep.subr.mxu0 0.0
      %1023 = vmatpush1.msra.mxu0 0.0
      %1024 = vmatprep.subr.mxu0 0.0
      %1025 = vmatpush1.msra.mxu0 0.0
      %1026 = vmatprep.subr.mxu0 0.0
      %1027 = vmatpush1.msra.mxu0 0.0
      %1028 = vmatprep.subr.mxu0 0.0
      %1029 = vmatpush1.msra.mxu0 0.0
      %1030 = vmatprep.mubr.f32.mxu0 0.0
      %1031 = vmatmul.mubr.f32.gmra.mrb[0].mxu0 %v884
      %v1032 = vpop.f32.mrb[0].mxu0
      %v1033 = vadd.f32 %v863, %v1032
      %v1034 = vpop.f32.mrb[0].mxu0
      %v1035 = vadd.f32 %v867, %v1034
      %1036 = vmatprep.mubr.f32.mxu0 0.0
      %1037 = vmatmul.mubr.f32.gmra.mrb[0].mxu0 %v887
      %v1038 = vpop.f32.mrb[0].mxu0
      %v1039 = vadd.f32 %v863, %v1038
      %v1040 = vpop.f32.mrb[0].mxu0
      %v1041 = vadd.f32 %v867, %v1040
      %1042 = vdwg.mxu0
      %1043 = vmatprep.subr.mxu0 %v573
      %1044 = vmatpush1.msra.mxu0 %v572
      %1045 = vmatprep.subr.mxu0 %v579
      %1046 = vmatpush1.msra.mxu0 %v578
      %1047 = vmatprep.subr.mxu0 %v585
      %1048 = vmatpush1.msra.mxu0 %v584
      %1049 = vmatprep.subr.mxu0 %v591
      %1050 = vmatpush1.msra.mxu0 %v590
      %1051 = vmatprep.subr.mxu0 %v597
      %1052 = vmatpush1.msra.mxu0 %v596
      %1053 = vmatprep.subr.mxu0 %v603
      %1054 = vmatpush1.msra.mxu0 %v602
      %1055 = vmatprep.subr.mxu0 %v609
      %1056 = vmatpush1.msra.mxu0 %v608
      %1057 = vmatprep.subr.mxu0 %v615
      %1058 = vmatpush1.msra.mxu0 %v614
      %1059 = vmatprep.subr.mxu0 0.0
      %1060 = vmatpush1.msra.mxu0 0.0
      %1061 = vmatprep.subr.mxu0 0.0
      %1062 = vmatpush1.msra.mxu0 0.0
      %1063 = vmatprep.subr.mxu0 0.0
      %1064 = vmatpush1.msra.mxu0 0.0
      %1065 = vmatprep.subr.mxu0 0.0
      %1066 = vmatpush1.msra.mxu0 0.0
      %1067 = vmatprep.subr.mxu0 0.0
      %1068 = vmatpush1.msra.mxu0 0.0
      %1069 = vmatprep.subr.mxu0 0.0
      %1070 = vmatpush1.msra.mxu0 0.0
      %1071 = vmatprep.subr.mxu0 0.0
      %1072 = vmatpush1.msra.mxu0 0.0
      %1073 = vmatprep.subr.mxu0 0.0
      %1074 = vmatpush1.msra.mxu0 0.0
      %1075 = vmatprep.subr.mxu0 0.0
      %1076 = vmatpush1.msra.mxu0 0.0
      %1077 = vmatprep.subr.mxu0 0.0
      %1078 = vmatpush1.msra.mxu0 0.0
      %1079 = vmatprep.subr.mxu0 0.0
      %1080 = vmatpush1.msra.mxu0 0.0
      %1081 = vmatprep.subr.mxu0 0.0
      %1082 = vmatpush1.msra.mxu0 0.0
      %1083 = vmatprep.subr.mxu0 0.0
      %1084 = vmatpush1.msra.mxu0 0.0
      %1085 = vmatprep.subr.mxu0 0.0
      %1086 = vmatpush1.msra.mxu0 0.0
      %1087 = vmatprep.subr.mxu0 0.0
      %1088 = vmatpush1.msra.mxu0 0.0
      %1089 = vmatprep.subr.mxu0 0.0
      %1090 = vmatpush1.msra.mxu0 0.0
      %1091 = vmatprep.subr.mxu0 0.0
      %1092 = vmatpush1.msra.mxu0 0.0
      %1093 = vmatprep.subr.mxu0 0.0
      %1094 = vmatpush1.msra.mxu0 0.0
      %1095 = vmatprep.subr.mxu0 0.0
      %1096 = vmatpush1.msra.mxu0 0.0
      %1097 = vmatprep.subr.mxu0 0.0
      %1098 = vmatpush1.msra.mxu0 0.0
      %1099 = vmatprep.subr.mxu0 0.0
      %1100 = vmatpush1.msra.mxu0 0.0
      %1101 = vmatprep.subr.mxu0 0.0
      %1102 = vmatpush1.msra.mxu0 0.0
      %1103 = vmatprep.subr.mxu0 0.0
      %1104 = vmatpush1.msra.mxu0 0.0
      %1105 = vmatprep.subr.mxu0 0.0
      %1106 = vmatpush1.msra.mxu0 0.0
      %1107 = vmatprep.mubr.f32.mxu0 0.0
      %1108 = vmatmul.mubr.f32.gmra.mrb[0].mxu0 %v884
      %v1109 = vpop.f32.mrb[0].mxu0
      %v1110 = vadd.f32 %v871, %v1109
      %v1111 = vpop.f32.mrb[0].mxu0
      %v1112 = vadd.f32 %v875, %v1111
      %1113 = vmatprep.mubr.f32.mxu0 0.0
      %1114 = vmatmul.mubr.f32.gmra.mrb[0].mxu0 %v887
      %v1115 = vpop.f32.mrb[0].mxu0
      %v1116 = vadd.f32 %v871, %v1115
      %v1117 = vpop.f32.mrb[0].mxu0
      %v1118 = vadd.f32 %v875, %v1117
      %1119 = vdwg.mxu0
      %v1120 = vadd.f32 %v956, %v340
      %v1121 = vadd.f32 %v958, %v341
      %v1122 = vadd.f32 %v1033, %v342
      %v1123 = vadd.f32 %v1035, %v343
      %v1124 = vadd.f32 %v1110, %v344
      %v1125 = vadd.f32 %v1112, %v345
      %v1126 = vadd.f32 %v962, %v346
      %v1127 = vadd.f32 %v964, %v347
      %v1128 = vadd.f32 %v1039, %v348
      %v1129 = vadd.f32 %v1041, %v349
      %v1130 = vadd.f32 %v1116, %v350
      %v1131 = vadd.f32 %v1118, %v351
      %1132 = vst [vmem:[%s338] sm:$0xff] %v1120
      %1133 = vst [vmem:[%s338 + $0x8] sm:$0xff] %v1121
      %1134 = vst [vmem:[%s338 + $0x10] sm:$0xff] %v1122
      %1135 = vst [vmem:[%s338 + $0x18] sm:$0xff] %v1123
      %1136 = vst [vmem:[%s338 + $0x20] sm:$0xff] %v1124
      %1137 = vst [vmem:[%s338 + $0x28] sm:$0xff] %v1125
      %1138 = vst [vmem:[%s338 + $0x30] sm:$0xff] %v1126
      %1139 = vst [vmem:[%s338 + $0x38] sm:$0xff] %v1127
      %1140 = vst [vmem:[%s338 + $0x40] sm:$0xff] %v1128
      %1141 = vst [vmem:[%s338 + $0x48] sm:$0xff] %v1129
      %1142 = vst [vmem:[%s338 + $0x50] sm:$0xff] %v1130
      %1143 = vst [vmem:[%s338 + $0x58] sm:$0xff] %v1131
      %s1144 = smul.u32 2, %s21
      %p1145 = scmp.lt.s32.totalorder %s20, 11
      %s1146 = scalar_select %p1145, %s20, 11
      %p1147 = scmp.lt.s32.totalorder %s1144, 1
      %s1148 = scalar_select %p1147, %s1144, 1
      %s1149 = smul.addr %s1148, 6
      %s1150 = smul.addr %s1146, 12
      %s1151 = sadd.s32 %s1149, %s1150
      %s1152 = smul.addr %s1151, 8
      %s1153 = scalar_lea.vmem %s5, %s1152
      // Predicated region
      $region41: #{adapter_tuning_forward.1} parent=39 // pred_check
        %p1154 = pneg %p180
      $region42: #{adapter_tuning_forward.1} parent=39 // pred_check_branch
        %1156 = sbr.rel (%p1154) target = $region44
      $region43: #{adapter_tuning_forward.1} parent=39 // pred_region
        %s1157 = smul.u32 2, %s21
      $region44: #{adapter_tuning_forward.1} parent=39 // pred_fallthru
        _
    $region40: #{adapter_tuning_forward.1} parent=5 // pred_fallthru
      _
    %p1158 = scmp.le.s32.totalorder 2, %s11
    // Predicated region
    $region45: #{adapter_tuning_forward.1} parent=5 // pred_check
      %p1159 = pneg %p1158
    $region46: #{adapter_tuning_forward.1} parent=5 // pred_check_branch
      %1161 = sbr.rel (%p1159) target = $region48
    $region47: #{adapter_tuning_forward.1} parent=5 // pred_region
      %s1162 = ssub.s32 %s11, 2
      // Predicated region
      $region49: #{adapter_tuning_forward.1} parent=47 // pred_check
        %p1163 = pneg %p186
      $region50: #{adapter_tuning_forward.1} parent=47 // pred_check_branch
        %1165 = sbr.rel (%p1163) target = $region52
      $region51: #{adapter_tuning_forward.1} parent=47 // pred_region
        %s1166 = smul.u32 2, %s23
        %p1167 = scmp.lt.s32.totalorder %s22, 11
        %s1168 = scalar_select %p1167, %s22, 11
        %p1169 = scmp.lt.s32.totalorder %s1166, 1
        %s1170 = scalar_select %p1169, %s1166, 1
        %s1171 = smul.addr %s1170, 6
        %s1172 = smul.addr %s1168, 12
        %s1173 = sadd.s32 %s1171, %s1172
        %s1174 = smul.addr %s1173, 8
        %s1175 = scalar_lea.vmem %s5, %s1174
      $region52: #{adapter_tuning_forward.1} parent=47 // pred_fallthru
        _
    $region48: #{adapter_tuning_forward.1} parent=5 // pred_fallthru
      _
  $region6: #{adapter_tuning_forward.1} parent=0 // loop_footer
    %s15 = sadd.s32 1, %s11
  $region7: #{adapter_tuning_forward.1} parent=0 // loop_footer_branch
    %10 = sbr.rel target = $region3
  $region8: #{adapter_tuning_forward.1} parent=0 // loop_exit
    _

</llo_original>
